<compile_context>
chip_gen: v7x
topology: tpu7x:2x2x1
jax: 0.10.0
libtpu: 0.0.40
codegen_flags: <defaults>
</compile_context>

<pallas_src>
import jax
import jax.numpy as jnp
from jax.experimental import pallas as pl
from jax.experimental.pallas import tpu as pltpu

NEG_SLOPE = 0.01   # nn.LeakyReLU() default negative_slope
BN_EPS = 1e-5      # nn.BatchNorm1d default eps


def _make_kernel(B, Lout, Cin, Cout, has_proj, mm_dtype):
    f32 = jnp.float32
    inv_n = 1.0 / float(B * Lout)

    def _bn(y, gamma, beta):
        # train-mode BatchNorm1d: one-pass biased stats over (batch, length), f32.
        s = jnp.sum(y, axis=(0, 2), keepdims=True)            # (1, Cout, 1)
        ss = jnp.sum(y * y, axis=(0, 2), keepdims=True)       # (1, Cout, 1)
        mean = s * inv_n
        var = jnp.maximum(ss * inv_n - mean * mean, 0.0)
        scale = jax.lax.rsqrt(var + BN_EPS) * gamma[None]     # (1, Cout, 1)
        return (y - mean) * scale + beta[None]

    def _lrelu(y):
        return jnp.where(y >= 0, y, NEG_SLOPE * y)

    def _conv(w_flat, x_stack):
        # (Cout, K) x (B, K, Lout) -> (B, Cout, Lout): one MXU matmul per batch,
        # L on the lane axis, f32 accumulation.  mm_dtype=bfloat16 is optional.
        wb = jnp.broadcast_to(w_flat[None], (B,) + w_flat.shape)
        return jnp.einsum('bok,bkl->bol',
                          wb.astype(mm_dtype), x_stack.astype(mm_dtype),
                          preferred_element_type=f32)

    def kernel(x_ref, w1_ref, w2_ref, wid_ref, bn_ref, out_ref):
        bn = bn_ref[...]                       # (6, Cout, 1): g1,b1,g2,b2,g_id,b_id
        x_stack = x_ref[...].astype(f32)       # (B, 3*Cin, Lout) im2col of x

        # ---- conv1 (k=3, stride folded into the im2col stack) + BN + LeakyReLU ----
        h = _lrelu(_bn(_conv(w1_ref[...], x_stack), bn[0], bn[1]))   # (B, Cout, Lout)

        # ---- conv2 (k=3, stride 1, pad 1): shifted stack built in-kernel ----
        zcol = jnp.zeros((B, Cout, 1), f32)
        h_m = jnp.concatenate([zcol, h[:, :, :Lout - 1]], axis=2)    # h[l-1]
        h_p = jnp.concatenate([h[:, :, 1:], zcol], axis=2)           # h[l+1]
        h_stack = jnp.concatenate([h_m, h, h_p], axis=1)             # (B, 3*Cout, Lout)
        o2 = _bn(_conv(w2_ref[...], h_stack), bn[2], bn[3])

        # ---- identity path ----
        # middle tap block == x subsampled at the conv stride (exact x if stride==1)
        x_mid = x_stack[:, Cin:2 * Cin, :]
        if has_proj:
            identity = _bn(_conv(wid_ref[...], x_mid), bn[4], bn[5])
        else:
            identity = x_mid

        out_ref[...] = _lrelu(o2 + identity).astype(out_ref.dtype)

    return kernel


def residual_block_1d(x_ncl, w1, w2, wid, bn_params, stride,
                      matmul_dtype=jnp.float32):
    """x_ncl: (B, Cin, L); w1: (Cout, Cin, 3); w2: (Cout, Cout, 3); wid: (Cout, Cin, 1);
    bn_params: (6, Cout) = [gamma1, beta1, gamma2, beta2, gamma_id, beta_id].
    Returns (B, Cout, Lout), matching the PyTorch module (NCL in / NCL out).
    Set matmul_dtype=jnp.bfloat16 to run the MXU matmuls in bf16 (f32 accumulate)."""
    B, Cin, L = x_ncl.shape
    Cout = w1.shape[0]
    has_proj = (Cin != Cout) or (stride != 1)
    Lout = (L - 1) // stride + 1

    # Stride-aware im2col of the input (cheap XLA strided slices, one HBM pass):
    # channel block k holds x at padded position stride*l + k, k in {0,1,2}.
    xp = jnp.pad(x_ncl.astype(jnp.float32), ((0, 0), (0, 0), (1, 1)))
    span = stride * (Lout - 1) + 1
    taps = [jax.lax.slice(xp, (0, 0, k), (B, Cin, k + span), (1, 1, stride))
            for k in range(3)]
    x_im2col = jnp.concatenate(taps, axis=1)                       # (B, 3*Cin, Lout)

    # Weights flattened to (Cout, 3*C), matching the tap-major channel stacking.
    w1_flat = jnp.transpose(w1, (0, 2, 1)).reshape(Cout, 3 * Cin).astype(jnp.float32)
    w2_flat = jnp.transpose(w2, (0, 2, 1)).reshape(Cout, 3 * Cout).astype(jnp.float32)
    wid_mat = wid[:, :, 0].astype(jnp.float32)                     # (Cout, Cin)
    bn = bn_params.astype(jnp.float32).reshape(6, Cout, 1)

    kernel = _make_kernel(B, Lout, Cin, Cout, has_proj, matmul_dtype)
    vmem = pl.BlockSpec(memory_space=pltpu.MemorySpace.VMEM)

    # Explicit VMEM budget: input stack + ~10 activation-sized temporaries + weights.
    act = B * Cout * Lout
    est_bytes = 4 * (B * 3 * Cin * Lout + 10 * act
                     + Cout * (3 * Cin + 3 * Cout + Cin) + 6 * Cout)
    vmem_limit = int(min(100 * 2**20, max(8 * 2**20, 8 * est_bytes)))

    out = pl.pallas_call(
        kernel,
        out_shape=jax.ShapeDtypeStruct((B, Cout, Lout), jnp.float32),
        in_specs=[vmem] * 5,
        out_specs=vmem,
        compiler_params=pltpu.CompilerParams(vmem_limit_bytes=vmem_limit),
    )(x_im2col, w1_flat, w2_flat, wid_mat, bn)
    return out


# ---------------- pure-JAX reference (PyTorch semantics, NCL layout) ----------------
def _ref_forward(x, w1, w2, wid, bn, stride):
    def conv1d(x, w, s, pad):
        return jax.lax.conv_general_dilated(
            x, w, (s,), [(pad, pad)], dimension_numbers=("NCH", "OIH", "NCH"))

    def bn_train(y, g, b):
        m = y.mean(axis=(0, 2), keepdims=True)
        v = ((y - m) ** 2).mean(axis=(0, 2), keepdims=True)
        return (y - m) / jnp.sqrt(v + BN_EPS) * g[None, :, None] + b[None, :, None]

    def lrelu(y):
        return jnp.where(y >= 0, y, NEG_SLOPE * y)

    Cin, Cout = x.shape[1], w1.shape[0]
    out = lrelu(bn_train(conv1d(x, w1, stride, 1), bn[0], bn[1]))
    out = bn_train(conv1d(out, w2, 1, 1), bn[2], bn[3])
    if Cin != Cout or stride != 1:
        ident = bn_train(conv1d(x, wid, stride, 0), bn[4], bn[5])
    else:
        ident = x
    return lrelu(out + ident)


if __name__ == "__main__":
    key = jax.random.PRNGKey(0)

    def make_case(k, B, Cin, Cout, L):
        ks = jax.random.split(k, 10)
        x = jax.random.normal(ks[0], (B, Cin, L), jnp.float32)
        w1 = 0.3 * jax.random.normal(ks[1], (Cout, Cin, 3), jnp.float32)
        w2 = 0.3 * jax.random.normal(ks[2], (Cout, Cout, 3), jnp.float32)
        wid = 0.3 * jax.random.normal(ks[3], (Cout, Cin, 1), jnp.float32)
        bn = jnp.stack([
            1.0 + 0.1 * jax.random.normal(ks[4], (Cout,), jnp.float32),  # gamma1
            0.1 * jax.random.normal(ks[5], (Cout,), jnp.float32),        # beta1
            1.0 + 0.1 * jax.random.normal(ks[6], (Cout,), jnp.float32),  # gamma2
            0.1 * jax.random.normal(ks[7], (Cout,), jnp.float32),        # beta2
            1.0 + 0.1 * jax.random.normal(ks[8], (Cout,), jnp.float32),  # gamma_id
            0.1 * jax.random.normal(ks[9], (Cout,), jnp.float32),        # beta_id
        ]).astype(jnp.float32)
        return x, w1, w2, wid, bn

    k1, k2 = jax.random.split(key)
    cases = [
        (k1, 2, 4, 8, 16, 2),   # projection path: channel change + stride 2
        (k2, 2, 8, 8, 16, 1),   # plain identity path: same channels, stride 1
    ]
    for (k, B, Cin, Cout, L, stride) in cases:
        x, w1, w2, wid, bn = make_case(k, B, Cin, Cout, L)
        out = jax.block_until_ready(residual_block_1d(x, w1, w2, wid, bn, stride))
        ref = _ref_forward(x, w1, w2, wid, bn, stride)
        assert out.shape == ref.shape, (out.shape, ref.shape)
        err = float(jnp.max(jnp.abs(out - ref)))
        assert jnp.allclose(out, ref, rtol=1e-3, atol=1e-3), err

    print("KERNEL_OK")
</pallas_src>

<mosaic_0001>
module attributes {stable_mosaic.version = 11 : i64} {
  func.func @kernel(%arg0: memref<2x12x8xf32, #tpu.memory_space<vmem>>, %arg1: memref<8x12xf32, #tpu.memory_space<vmem>>, %arg2: memref<8x24xf32, #tpu.memory_space<vmem>>, %arg3: memref<8x4xf32, #tpu.memory_space<vmem>>, %arg4: memref<6x8x1xf32, #tpu.memory_space<vmem>>, %arg5: memref<2x8x8xf32, #tpu.memory_space<vmem>>) attributes {dimension_semantics = [], scalar_prefetch = 0 : i64, scratch_operands = 0 : i64, tpu.core_type = #tpu.core_type<tc>} {
    %c0 = arith.constant 0 : index
    %c0_0 = arith.constant 0 : index
    %c0_1 = arith.constant 0 : index
    %0 = vector.load %arg4[%c0, %c0_0, %c0_1] : memref<6x8x1xf32, #tpu.memory_space<vmem>>, vector<6x8x1xf32>
    %c0_2 = arith.constant 0 : index
    %c0_3 = arith.constant 0 : index
    %c0_4 = arith.constant 0 : index
    %1 = vector.load %arg0[%c0_2, %c0_3, %c0_4] : memref<2x12x8xf32, #tpu.memory_space<vmem>>, vector<2x12x8xf32>
    %c0_5 = arith.constant 0 : index
    %c0_6 = arith.constant 0 : index
    %2 = vector.load %arg1[%c0_5, %c0_6] : memref<8x12xf32, #tpu.memory_space<vmem>>, vector<8x12xf32>
    %3 = vector.shape_cast %2 : vector<8x12xf32> to vector<1x8x12xf32>
    %4 = vector.shape_cast %3 : vector<1x8x12xf32> to vector<1x8x12xf32>
    %5 = vector.broadcast %4 : vector<1x8x12xf32> to vector<2x8x12xf32>
    "tpu.trace_start"() <{level = 10 : i32, message = "bok,bkl->bol"}> : () -> ()
    %cst = arith.constant dense<0.000000e+00> : vector<2x8x8xf32>
    %6 = tpu.matmul %5, %1, %cst {dimension_numbers = #tpu.dot_dimension_numbers<[2], [1], [1], [2], [0, 0, 0, 1, 1, 2], [0], [0]>} : vector<2x8x12xf32>, vector<2x12x8xf32>, vector<2x8x8xf32> -> vector<2x8x8xf32>
    "tpu.trace_stop"() : () -> ()
    %7 = vector.extract_strided_slice %0 {offsets = [0, 0, 0], sizes = [1, 8, 1], strides = [1, 1, 1]} : vector<6x8x1xf32> to vector<1x8x1xf32>
    %8 = vector.shape_cast %7 : vector<1x8x1xf32> to vector<8x1xf32>
    %9 = vector.extract_strided_slice %0 {offsets = [1, 0, 0], sizes = [1, 8, 1], strides = [1, 1, 1]} : vector<6x8x1xf32> to vector<1x8x1xf32>
    %10 = vector.shape_cast %9 : vector<1x8x1xf32> to vector<8x1xf32>
    %cst_7 = arith.constant dense<0.000000e+00> : vector<8xf32>
    %11 = vector.multi_reduction <add>, %6, %cst_7 [0, 2] : vector<2x8x8xf32> to vector<8xf32>
    %12 = vector.shape_cast %11 : vector<8xf32> to vector<1x8x1xf32>
    %13 = arith.mulf %6, %6 : vector<2x8x8xf32>
    %cst_8 = arith.constant dense<0.000000e+00> : vector<8xf32>
    %14 = vector.multi_reduction <add>, %13, %cst_8 [0, 2] : vector<2x8x8xf32> to vector<8xf32>
    %15 = vector.shape_cast %14 : vector<8xf32> to vector<1x8x1xf32>
    %cst_9 = arith.constant 6.250000e-02 : f32
    %16 = vector.broadcast %cst_9 : f32 to vector<1x8x1xf32>
    %17 = arith.mulf %12, %16 : vector<1x8x1xf32>
    %cst_10 = arith.constant 6.250000e-02 : f32
    %18 = vector.broadcast %cst_10 : f32 to vector<1x8x1xf32>
    %19 = arith.mulf %15, %18 : vector<1x8x1xf32>
    %20 = arith.mulf %17, %17 : vector<1x8x1xf32>
    %21 = arith.subf %19, %20 : vector<1x8x1xf32>
    %cst_11 = arith.constant 0.000000e+00 : f32
    %22 = vector.broadcast %cst_11 : f32 to vector<1x8x1xf32>
    %23 = arith.maximumf %21, %22 : vector<1x8x1xf32>
    %cst_12 = arith.constant 9.99999974E-6 : f32
    %24 = vector.broadcast %cst_12 : f32 to vector<1x8x1xf32>
    %25 = arith.addf %23, %24 : vector<1x8x1xf32>
    %26 = math.rsqrt %25 : vector<1x8x1xf32>
    %27 = vector.shape_cast %8 : vector<8x1xf32> to vector<1x8x1xf32>
    %28 = arith.mulf %26, %27 : vector<1x8x1xf32>
    %29 = vector.broadcast %17 : vector<1x8x1xf32> to vector<2x8x8xf32>
    %30 = arith.subf %6, %29 : vector<2x8x8xf32>
    %31 = vector.broadcast %28 : vector<1x8x1xf32> to vector<2x8x8xf32>
    %32 = arith.mulf %30, %31 : vector<2x8x8xf32>
    %33 = vector.shape_cast %10 : vector<8x1xf32> to vector<1x8x1xf32>
    %34 = vector.broadcast %33 : vector<1x8x1xf32> to vector<2x8x8xf32>
    %35 = arith.addf %32, %34 : vector<2x8x8xf32>
    %cst_13 = arith.constant 0.000000e+00 : f32
    %36 = vector.broadcast %cst_13 : f32 to vector<2x8x8xf32>
    %37 = arith.cmpf oge, %35, %36 : vector<2x8x8xf32>
    %cst_14 = arith.constant 0.00999999977 : f32
    %38 = vector.broadcast %cst_14 : f32 to vector<2x8x8xf32>
    %39 = arith.mulf %38, %35 : vector<2x8x8xf32>
    %40 = arith.select %37, %35, %39 : vector<2x8x8xi1>, vector<2x8x8xf32>
    %cst_15 = arith.constant 0.000000e+00 : f32
    %41 = vector.broadcast %cst_15 : f32 to vector<2x8x1xf32>
    %42 = vector.extract_strided_slice %40 {offsets = [0, 0, 0], sizes = [2, 8, 7], strides = [1, 1, 1]} : vector<2x8x8xf32> to vector<2x8x7xf32>
    %43 = tpu.concatenate %41, %42 in 2 : vector<2x8x1xf32>, vector<2x8x7xf32> -> vector<2x8x8xf32>
    %44 = vector.extract_strided_slice %40 {offsets = [0, 0, 1], sizes = [2, 8, 7], strides = [1, 1, 1]} : vector<2x8x8xf32> to vector<2x8x7xf32>
    %45 = tpu.concatenate %44, %41 in 2 : vector<2x8x7xf32>, vector<2x8x1xf32> -> vector<2x8x8xf32>
    %46 = tpu.concatenate %43, %40, %45 in 1 : vector<2x8x8xf32>, vector<2x8x8xf32>, vector<2x8x8xf32> -> vector<2x24x8xf32>
    %c0_16 = arith.constant 0 : index
    %c0_17 = arith.constant 0 : index
    %47 = vector.load %arg2[%c0_16, %c0_17] : memref<8x24xf32, #tpu.memory_space<vmem>>, vector<8x24xf32>
    %48 = vector.shape_cast %47 : vector<8x24xf32> to vector<1x8x24xf32>
    %49 = vector.shape_cast %48 : vector<1x8x24xf32> to vector<1x8x24xf32>
    %50 = vector.broadcast %49 : vector<1x8x24xf32> to vector<2x8x24xf32>
    "tpu.trace_start"() <{level = 10 : i32, message = "bok,bkl->bol"}> : () -> ()
    %cst_18 = arith.constant dense<0.000000e+00> : vector<2x8x8xf32>
    %51 = tpu.matmul %50, %46, %cst_18 {dimension_numbers = #tpu.dot_dimension_numbers<[2], [1], [1], [2], [0, 0, 0, 1, 1, 2], [0], [0]>} : vector<2x8x24xf32>, vector<2x24x8xf32>, vector<2x8x8xf32> -> vector<2x8x8xf32>
    "tpu.trace_stop"() : () -> ()
    %52 = vector.extract_strided_slice %0 {offsets = [2, 0, 0], sizes = [1, 8, 1], strides = [1, 1, 1]} : vector<6x8x1xf32> to vector<1x8x1xf32>
    %53 = vector.shape_cast %52 : vector<1x8x1xf32> to vector<8x1xf32>
    %54 = vector.extract_strided_slice %0 {offsets = [3, 0, 0], sizes = [1, 8, 1], strides = [1, 1, 1]} : vector<6x8x1xf32> to vector<1x8x1xf32>
    %55 = vector.shape_cast %54 : vector<1x8x1xf32> to vector<8x1xf32>
    %cst_19 = arith.constant dense<0.000000e+00> : vector<8xf32>
    %56 = vector.multi_reduction <add>, %51, %cst_19 [0, 2] : vector<2x8x8xf32> to vector<8xf32>
    %57 = vector.shape_cast %56 : vector<8xf32> to vector<1x8x1xf32>
    %58 = arith.mulf %51, %51 : vector<2x8x8xf32>
    %cst_20 = arith.constant dense<0.000000e+00> : vector<8xf32>
    %59 = vector.multi_reduction <add>, %58, %cst_20 [0, 2] : vector<2x8x8xf32> to vector<8xf32>
    %60 = vector.shape_cast %59 : vector<8xf32> to vector<1x8x1xf32>
    %cst_21 = arith.constant 6.250000e-02 : f32
    %61 = vector.broadcast %cst_21 : f32 to vector<1x8x1xf32>
    %62 = arith.mulf %57, %61 : vector<1x8x1xf32>
    %cst_22 = arith.constant 6.250000e-02 : f32
    %63 = vector.broadcast %cst_22 : f32 to vector<1x8x1xf32>
    %64 = arith.mulf %60, %63 : vector<1x8x1xf32>
    %65 = arith.mulf %62, %62 : vector<1x8x1xf32>
    %66 = arith.subf %64, %65 : vector<1x8x1xf32>
    %cst_23 = arith.constant 0.000000e+00 : f32
    %67 = vector.broadcast %cst_23 : f32 to vector<1x8x1xf32>
    %68 = arith.maximumf %66, %67 : vector<1x8x1xf32>
    %cst_24 = arith.constant 9.99999974E-6 : f32
    %69 = vector.broadcast %cst_24 : f32 to vector<1x8x1xf32>
    %70 = arith.addf %68, %69 : vector<1x8x1xf32>
    %71 = math.rsqrt %70 : vector<1x8x1xf32>
    %72 = vector.shape_cast %53 : vector<8x1xf32> to vector<1x8x1xf32>
    %73 = arith.mulf %71, %72 : vector<1x8x1xf32>
    %74 = vector.broadcast %62 : vector<1x8x1xf32> to vector<2x8x8xf32>
    %75 = arith.subf %51, %74 : vector<2x8x8xf32>
    %76 = vector.broadcast %73 : vector<1x8x1xf32> to vector<2x8x8xf32>
    %77 = arith.mulf %75, %76 : vector<2x8x8xf32>
    %78 = vector.shape_cast %55 : vector<8x1xf32> to vector<1x8x1xf32>
    %79 = vector.broadcast %78 : vector<1x8x1xf32> to vector<2x8x8xf32>
    %80 = arith.addf %77, %79 : vector<2x8x8xf32>
    %81 = vector.extract_strided_slice %1 {offsets = [0, 4, 0], sizes = [2, 4, 8], strides = [1, 1, 1]} : vector<2x12x8xf32> to vector<2x4x8xf32>
    %c0_25 = arith.constant 0 : index
    %c0_26 = arith.constant 0 : index
    %82 = vector.load %arg3[%c0_25, %c0_26] : memref<8x4xf32, #tpu.memory_space<vmem>>, vector<8x4xf32>
    %83 = vector.shape_cast %82 : vector<8x4xf32> to vector<1x8x4xf32>
    %84 = vector.shape_cast %83 : vector<1x8x4xf32> to vector<1x8x4xf32>
    %85 = vector.broadcast %84 : vector<1x8x4xf32> to vector<2x8x4xf32>
    "tpu.trace_start"() <{level = 10 : i32, message = "bok,bkl->bol"}> : () -> ()
    %cst_27 = arith.constant dense<0.000000e+00> : vector<2x8x8xf32>
    %86 = tpu.matmul %85, %81, %cst_27 {dimension_numbers = #tpu.dot_dimension_numbers<[2], [1], [1], [2], [0, 0, 0, 1, 1, 2], [0], [0]>} : vector<2x8x4xf32>, vector<2x4x8xf32>, vector<2x8x8xf32> -> vector<2x8x8xf32>
    "tpu.trace_stop"() : () -> ()
    %87 = vector.extract_strided_slice %0 {offsets = [4, 0, 0], sizes = [1, 8, 1], strides = [1, 1, 1]} : vector<6x8x1xf32> to vector<1x8x1xf32>
    %88 = vector.shape_cast %87 : vector<1x8x1xf32> to vector<8x1xf32>
    %89 = vector.extract_strided_slice %0 {offsets = [5, 0, 0], sizes = [1, 8, 1], strides = [1, 1, 1]} : vector<6x8x1xf32> to vector<1x8x1xf32>
    %90 = vector.shape_cast %89 : vector<1x8x1xf32> to vector<8x1xf32>
    %cst_28 = arith.constant dense<0.000000e+00> : vector<8xf32>
    %91 = vector.multi_reduction <add>, %86, %cst_28 [0, 2] : vector<2x8x8xf32> to vector<8xf32>
    %92 = vector.shape_cast %91 : vector<8xf32> to vector<1x8x1xf32>
    %93 = arith.mulf %86, %86 : vector<2x8x8xf32>
    %cst_29 = arith.constant dense<0.000000e+00> : vector<8xf32>
    %94 = vector.multi_reduction <add>, %93, %cst_29 [0, 2] : vector<2x8x8xf32> to vector<8xf32>
    %95 = vector.shape_cast %94 : vector<8xf32> to vector<1x8x1xf32>
    %cst_30 = arith.constant 6.250000e-02 : f32
    %96 = vector.broadcast %cst_30 : f32 to vector<1x8x1xf32>
    %97 = arith.mulf %92, %96 : vector<1x8x1xf32>
    %cst_31 = arith.constant 6.250000e-02 : f32
    %98 = vector.broadcast %cst_31 : f32 to vector<1x8x1xf32>
    %99 = arith.mulf %95, %98 : vector<1x8x1xf32>
    %100 = arith.mulf %97, %97 : vector<1x8x1xf32>
    %101 = arith.subf %99, %100 : vector<1x8x1xf32>
    %cst_32 = arith.constant 0.000000e+00 : f32
    %102 = vector.broadcast %cst_32 : f32 to vector<1x8x1xf32>
    %103 = arith.maximumf %101, %102 : vector<1x8x1xf32>
    %cst_33 = arith.constant 9.99999974E-6 : f32
    %104 = vector.broadcast %cst_33 : f32 to vector<1x8x1xf32>
    %105 = arith.addf %103, %104 : vector<1x8x1xf32>
    %106 = math.rsqrt %105 : vector<1x8x1xf32>
    %107 = vector.shape_cast %88 : vector<8x1xf32> to vector<1x8x1xf32>
    %108 = arith.mulf %106, %107 : vector<1x8x1xf32>
    %109 = vector.broadcast %97 : vector<1x8x1xf32> to vector<2x8x8xf32>
    %110 = arith.subf %86, %109 : vector<2x8x8xf32>
    %111 = vector.broadcast %108 : vector<1x8x1xf32> to vector<2x8x8xf32>
    %112 = arith.mulf %110, %111 : vector<2x8x8xf32>
    %113 = vector.shape_cast %90 : vector<8x1xf32> to vector<1x8x1xf32>
    %114 = vector.broadcast %113 : vector<1x8x1xf32> to vector<2x8x8xf32>
    %115 = arith.addf %112, %114 : vector<2x8x8xf32>
    %116 = arith.addf %80, %115 : vector<2x8x8xf32>
    %cst_34 = arith.constant 0.000000e+00 : f32
    %117 = vector.broadcast %cst_34 : f32 to vector<2x8x8xf32>
    %118 = arith.cmpf oge, %116, %117 : vector<2x8x8xf32>
    %cst_35 = arith.constant 0.00999999977 : f32
    %119 = vector.broadcast %cst_35 : f32 to vector<2x8x8xf32>
    %120 = arith.mulf %119, %116 : vector<2x8x8xf32>
    %121 = arith.select %118, %116, %120 : vector<2x8x8xi1>, vector<2x8x8xf32>
    %c0_36 = arith.constant 0 : index
    %c0_37 = arith.constant 0 : index
    %c0_38 = arith.constant 0 : index
    %122 = vector.load %arg5[%c0_36, %c0_37, %c0_38] : memref<2x8x8xf32, #tpu.memory_space<vmem>>, vector<2x8x8xf32>
    tpu.vector_store %arg5[%c0_36, %c0_37, %c0_38], %121 {strides = array<i32>} : memref<2x8x8xf32, #tpu.memory_space<vmem>>, vector<2x8x8xf32>,
    return
  }
}

</mosaic_0001>

<llo_original>
// kernel: tpu_custom_call.1
$region0: #{tpu_custom_call.1}
  #allocation0 [shape = 'u32[]', space=smem, size = 0x4, offset = 0x4, fixed_abs, tag = 'smem constant byte address 0x4 - core index']
  #allocation1 [shape = 'u32[144,128]{1,0:T(1,128)}', space=vmem, size = 0x12000, scoped, tag = 'internal scratch']
  %s0 = inlined_call_operand.vmem [shape: f32[2,12,8], index: 0, kind: input, shape index: {}]
  %s1 = inlined_call_operand.vmem [shape: f32[8,12], index: 1, kind: input, shape index: {}]
  %s2 = inlined_call_operand.vmem [shape: f32[8,24], index: 2, kind: input, shape index: {}]
  %s3 = inlined_call_operand.vmem [shape: f32[8,4], index: 3, kind: input, shape index: {}]
  %s4 = inlined_call_operand.vmem [shape: f32[6,8,1], index: 4, kind: input, shape index: {}]
  %s5 = inlined_call_operand.hbm [shape: f32[2,8,8], index: 5, kind: output, shape index: {}]
  %s6 = sld [smem:[#allocation0]]
  $region30: #{tpu_custom_call.1} parent=0
    _
  %s8 = ssub.s32 1, %s6
  %s9 = scalar_select 0, %s8, %s6
  $region1: #{tpu_custom_call.1} parent=0
    #allocation2 [shape = 'u8[8192]{0}', space=vmem, size = 0x2000, scoped, tag = 'output window, operand 0, single buffered']
    #allocation3 [shape = 's32[1]{0}', space=sflag, size = 0x4, scoped, tag = 'scoped memory for tpu_custom_call.1']
    %10 = vsyncpa [#allocation3], 0
    // Predicated region
    $region2: #{tpu_custom_call.1} parent=1 // pred_check
      _
    $region3: #{tpu_custom_call.1} parent=1 // pred_check_branch
      %12 = sbr.rel (0) target = $region5
    $region4: #{tpu_custom_call.1} parent=1 // pred_region
      _
    $region5: #{tpu_custom_call.1} parent=1 // pred_fallthru
      _
    // Predicated region
    $region6: #{tpu_custom_call.1} parent=1 // pred_check
      _
    $region7: #{tpu_custom_call.1} parent=1 // pred_check_branch
      %14 = sbr.rel (0) target = $region9
    $region8: #{tpu_custom_call.1} parent=1 // pred_region
      _
    $region9: #{tpu_custom_call.1} parent=1 // pred_fallthru
      _
    // Predicated region
    $region10: #{tpu_custom_call.1} parent=1 // pred_check
      _
    $region11: #{tpu_custom_call.1} parent=1 // pred_check_branch
      %16 = sbr.rel (0) target = $region13
    $region12: #{tpu_custom_call.1} parent=1 // pred_region
      _
    $region13: #{tpu_custom_call.1} parent=1 // pred_fallthru
      _
    // Predicated region
    $region14: #{tpu_custom_call.1} parent=1 // pred_check
      _
    $region15: #{tpu_custom_call.1} parent=1 // pred_check_branch
      %18 = sbr.rel (0) target = $region17
    $region16: #{tpu_custom_call.1} parent=1 // pred_region
      _
    $region17: #{tpu_custom_call.1} parent=1 // pred_fallthru
      _
    // Predicated region
    $region18: #{tpu_custom_call.1} parent=1 // pred_check
      _
    $region19: #{tpu_custom_call.1} parent=1 // pred_check_branch
      %20 = sbr.rel (0) target = $region21
    $region20: #{tpu_custom_call.1} parent=1 // pred_region
      _
    $region21: #{tpu_custom_call.1} parent=1 // pred_fallthru
      _
    %v21 = vld [vmem:[%s4] sm:$0xff]
    %v22 = vld [vmem:[%s4 + $0x8] sm:$0xff]
    %v23 = vld [vmem:[%s4 + $0x10] sm:$0xff]
    %v24 = vld [vmem:[%s4 + $0x18] sm:$0xff]
    %v25 = vld [vmem:[%s4 + $0x20] sm:$0xff]
    %v26 = vld [vmem:[%s4 + $0x28] sm:$0xff]
    %v27 = vld [vmem:[%s0] sm:$0xff]
    %v28 = vld [vmem:[%s0 + $0x8] sm:$0xf]
    %v29 = vld [vmem:[%s0 + $0x10] sm:$0xff]
    %v30 = vld [vmem:[%s0 + $0x18] sm:$0xf]
    %v31 = vld [vmem:[%s1] sm:$0xff]
    %vm32 = vcmask 97280
    %v34 = vsel %vm32, %v31, 0
    %vm36 = vcmask 1043456
    %v38 = vsel %vm36, %v28, 0
    %40 = vmatprep.subr.mxu0 0.0
    %41 = vmatpush1.msra.mxu0 %v27
    %42 = vmatprep.subr.mxu0 0.0
    %43 = vmatpush1.msra.mxu0 %v38
    %44 = vmatprep.subr.mxu0 0.0
    %45 = vmatpush1.msra.mxu0 0.0
    %46 = vmatprep.subr.mxu0 0.0
    %47 = vmatpush1.msra.mxu0 0.0
    %48 = vmatprep.subr.mxu0 0.0
    %49 = vmatpush1.msra.mxu0 0.0
    %50 = vmatprep.subr.mxu0 0.0
    %51 = vmatpush1.msra.mxu0 0.0
    %52 = vmatprep.subr.mxu0 0.0
    %53 = vmatpush1.msra.mxu0 0.0
    %54 = vmatprep.subr.mxu0 0.0
    %55 = vmatpush1.msra.mxu0 0.0
    %56 = vmatprep.subr.mxu0 0.0
    %57 = vmatpush1.msra.mxu0 0.0
    %58 = vmatprep.subr.mxu0 0.0
    %59 = vmatpush1.msra.mxu0 0.0
    %60 = vmatprep.subr.mxu0 0.0
    %61 = vmatpush1.msra.mxu0 0.0
    %62 = vmatprep.subr.mxu0 0.0
    %63 = vmatpush1.msra.mxu0 0.0
    %64 = vmatprep.subr.mxu0 0.0
    %65 = vmatpush1.msra.mxu0 0.0
    %66 = vmatprep.subr.mxu0 0.0
    %67 = vmatpush1.msra.mxu0 0.0
    %68 = vmatprep.subr.mxu0 0.0
    %69 = vmatpush1.msra.mxu0 0.0
    %70 = vmatprep.subr.mxu0 0.0
    %71 = vmatpush1.msra.mxu0 0.0
    %72 = vmatprep.subr.mxu0 0.0
    %73 = vmatpush1.msra.mxu0 0.0
    %74 = vmatprep.subr.mxu0 0.0
    %75 = vmatpush1.msra.mxu0 0.0
    %76 = vmatprep.subr.mxu0 0.0
    %77 = vmatpush1.msra.mxu0 0.0
    %78 = vmatprep.subr.mxu0 0.0
    %79 = vmatpush1.msra.mxu0 0.0
    %80 = vmatprep.subr.mxu0 0.0
    %81 = vmatpush1.msra.mxu0 0.0
    %82 = vmatprep.subr.mxu0 0.0
    %83 = vmatpush1.msra.mxu0 0.0
    %84 = vmatprep.subr.mxu0 0.0
    %85 = vmatpush1.msra.mxu0 0.0
    %86 = vmatprep.subr.mxu0 0.0
    %87 = vmatpush1.msra.mxu0 0.0
    %88 = vmatprep.subr.mxu0 0.0
    %89 = vmatpush1.msra.mxu0 0.0
    %90 = vmatprep.subr.mxu0 0.0
    %91 = vmatpush1.msra.mxu0 0.0
    %92 = vmatprep.subr.mxu0 0.0
    %93 = vmatpush1.msra.mxu0 0.0
    %94 = vmatprep.subr.mxu0 0.0
    %95 = vmatpush1.msra.mxu0 0.0
    %96 = vmatprep.subr.mxu0 0.0
    %97 = vmatpush1.msra.mxu0 0.0
    %98 = vmatprep.subr.mxu0 0.0
    %99 = vmatpush1.msra.mxu0 0.0
    %100 = vmatprep.subr.mxu0 0.0
    %101 = vmatpush1.msra.mxu0 0.0
    %102 = vmatprep.subr.mxu0 0.0
    %103 = vmatpush1.msra.mxu0 0.0
    %104 = vmatprep.mubr.f32.mxu0 0.0
    %105 = vmatmul.mubr.f32.gmra.mrb[0].mxu0 %v34
    %v106 = vpop.f32.mrb[0].mxu0
    %v107 = vadd.f32 0.0, %v106
    %v108 = vpop.f32.mrb[0].mxu0
    %109 = vdwg.mxu0
    %v111 = vsel %vm36, %v30, 0
    %113 = vmatprep.subr.mxu0 0.0
    %114 = vmatpush1.msra.mxu0 %v29
    %115 = vmatprep.subr.mxu0 0.0
    %116 = vmatpush1.msra.mxu0 %v111
    %117 = vmatprep.subr.mxu0 0.0
    %118 = vmatpush1.msra.mxu0 0.0
    %119 = vmatprep.subr.mxu0 0.0
    %120 = vmatpush1.msra.mxu0 0.0
    %121 = vmatprep.subr.mxu0 0.0
    %122 = vmatpush1.msra.mxu0 0.0
    %123 = vmatprep.subr.mxu0 0.0
    %124 = vmatpush1.msra.mxu0 0.0
    %125 = vmatprep.subr.mxu0 0.0
    %126 = vmatpush1.msra.mxu0 0.0
    %127 = vmatprep.subr.mxu0 0.0
    %128 = vmatpush1.msra.mxu0 0.0
    %129 = vmatprep.subr.mxu0 0.0
    %130 = vmatpush1.msra.mxu0 0.0
    %131 = vmatprep.subr.mxu0 0.0
    %132 = vmatpush1.msra.mxu0 0.0
    %133 = vmatprep.subr.mxu0 0.0
    %134 = vmatpush1.msra.mxu0 0.0
    %135 = vmatprep.subr.mxu0 0.0
    %136 = vmatpush1.msra.mxu0 0.0
    %137 = vmatprep.subr.mxu0 0.0
    %138 = vmatpush1.msra.mxu0 0.0
    %139 = vmatprep.subr.mxu0 0.0
    %140 = vmatpush1.msra.mxu0 0.0
    %141 = vmatprep.subr.mxu0 0.0
    %142 = vmatpush1.msra.mxu0 0.0
    %143 = vmatprep.subr.mxu0 0.0
    %144 = vmatpush1.msra.mxu0 0.0
    %145 = vmatprep.subr.mxu0 0.0
    %146 = vmatpush1.msra.mxu0 0.0
    %147 = vmatprep.subr.mxu0 0.0
    %148 = vmatpush1.msra.mxu0 0.0
    %149 = vmatprep.subr.mxu0 0.0
    %150 = vmatpush1.msra.mxu0 0.0
    %151 = vmatprep.subr.mxu0 0.0
    %152 = vmatpush1.msra.mxu0 0.0
    %153 = vmatprep.subr.mxu0 0.0
    %154 = vmatpush1.msra.mxu0 0.0
    %155 = vmatprep.subr.mxu0 0.0
    %156 = vmatpush1.msra.mxu0 0.0
    %157 = vmatprep.subr.mxu0 0.0
    %158 = vmatpush1.msra.mxu0 0.0
    %159 = vmatprep.subr.mxu0 0.0
    %160 = vmatpush1.msra.mxu0 0.0
    %161 = vmatprep.subr.mxu0 0.0
    %162 = vmatpush1.msra.mxu0 0.0
    %163 = vmatprep.subr.mxu0 0.0
    %164 = vmatpush1.msra.mxu0 0.0
    %165 = vmatprep.subr.mxu0 0.0
    %166 = vmatpush1.msra.mxu0 0.0
    %167 = vmatprep.subr.mxu0 0.0
    %168 = vmatpush1.msra.mxu0 0.0
    %169 = vmatprep.subr.mxu0 0.0
    %170 = vmatpush1.msra.mxu0 0.0
    %171 = vmatprep.subr.mxu0 0.0
    %172 = vmatpush1.msra.mxu0 0.0
    %173 = vmatprep.subr.mxu0 0.0
    %174 = vmatpush1.msra.mxu0 0.0
    %175 = vmatprep.subr.mxu0 0.0
    %176 = vmatpush1.msra.mxu0 0.0
    %177 = vmatprep.mubr.f32.mxu0 0.0
    %178 = vmatmul.mubr.f32.gmra.mrb[0].mxu0 %v34
    %v179 = vpop.f32.mrb[0].mxu0
    %v180 = vadd.f32 0.0, %v179
    %v181 = vpop.f32.mrb[0].mxu0
    %182 = vdwg.mxu0
    %vm183 = vcmask 64512
    %v184 = vsel %vm183, %v107, 0.0
    %v185 = vsel %vm183, %v180, 0.0
    %v186 = vadd.f32 %v184, %v185
    %187 = vadd.xlane.f32.xlu0 %v186
    %v188 = vpop.xlane.xlu0 %187
    %v189 = vmul.f32 %v107, %v107
    %v190 = vmul.f32 %v180, %v180
    %v191 = vsel %vm183, %v189, 0.0
    %v192 = vsel %vm183, %v190, 0.0
    %v193 = vadd.f32 %v191, %v192
    %194 = vadd.xlane.f32.xlu0 %v193
    %v195 = vpop.xlane.xlu0 %194
    %v196 = vmul.f32 %v188, 0.0625
    %v197 = vmul.f32 %v195, 0.0625
    %v198 = vmul.f32 %v196, %v196
    %v199 = vsub.f32 %v197, %v198
    %v200 = vmax.f32 %v199, 0.0
    %v201 = vadd.f32 %v200, 1e-05
    %v202 = vrsqrt.pop %v201
    %v203 = vmul.f32 %v202, %v21
    %v204 = vsub.f32 %v107, %v196
    %v205 = vsub.f32 %v180, %v196
    %207 = vset.pattern.permute.xlu0 0
    %208 = vperm.xlu0 %207, %v203
    %v209 = vpop.permute.xlu0 %208
    %v211 = vmul.f32 %v204, %v209
    %v212 = vmul.f32 %v205, %v209
    %214 = vset.pattern.permute.xlu0 0
    %215 = vperm.xlu0 %214, %v22
    %v216 = vpop.permute.xlu0 %215
    %v218 = vadd.f32 %v211, %v216
    %v219 = vadd.f32 %v212, %v216
    %vm220 = vcmp.ge.f32.partialorder %v218, 0.0
    %vm221 = vcmp.ge.f32.partialorder %v219, 0.0
    %v222 = vmul.f32 %v218, 0.01
    %v223 = vmul.f32 %v219, 0.01
    %v224 = vsel %vm220, %v218, %v222
    %v225 = vsel %vm221, %v219, %v223
    %228 = vrot.lane.b32.xlu0 %v224, 1
    %v229 = vpop.permute.xlu0 %228
    %230 = vrot.lane.b32.xlu0 %v225, 1
    %v231 = vpop.permute.xlu0 %230
    %vm234 = vcmask 7168
    %v235 = vsel %vm234, 0.0, %v229
    %v236 = vsel %vm234, 0.0, %v231
    %237 = vrot.lane.b32.xlu0 %v224, 127
    %v238 = vpop.permute.xlu0 %237
    %239 = vrot.lane.b32.xlu0 %v225, 127
    %v240 = vpop.permute.xlu0 %239
    %vm243 = vcmask 56320
    %v244 = vsel %vm243, %v238, 0.0
    %v245 = vsel %vm243, %v240, 0.0
    %v246 = vld [vmem:[%s2] sm:$0xff]
    %vm247 = vcmask 195584
    %v249 = vsel %vm247, %v246, 0
    %251 = vmatprep.subr.mxu0 0.0
    %252 = vmatpush1.msra.mxu0 %v235
    %253 = vmatprep.subr.mxu0 0.0
    %254 = vmatpush1.msra.mxu0 %v224
    %255 = vmatprep.subr.mxu0 0.0
    %256 = vmatpush1.msra.mxu0 %v244
    %257 = vmatprep.subr.mxu0 0.0
    %258 = vmatpush1.msra.mxu0 0.0
    %259 = vmatprep.subr.mxu0 0.0
    %260 = vmatpush1.msra.mxu0 0.0
    %261 = vmatprep.subr.mxu0 0.0
    %262 = vmatpush1.msra.mxu0 0.0
    %263 = vmatprep.subr.mxu0 0.0
    %264 = vmatpush1.msra.mxu0 0.0
    %265 = vmatprep.subr.mxu0 0.0
    %266 = vmatpush1.msra.mxu0 0.0
    %267 = vmatprep.subr.mxu0 0.0
    %268 = vmatpush1.msra.mxu0 0.0
    %269 = vmatprep.subr.mxu0 0.0
    %270 = vmatpush1.msra.mxu0 0.0
    %271 = vmatprep.subr.mxu0 0.0
    %272 = vmatpush1.msra.mxu0 0.0
    %273 = vmatprep.subr.mxu0 0.0
    %274 = vmatpush1.msra.mxu0 0.0
    %275 = vmatprep.subr.mxu0 0.0
    %276 = vmatpush1.msra.mxu0 0.0
    %277 = vmatprep.subr.mxu0 0.0
    %278 = vmatpush1.msra.mxu0 0.0
    %279 = vmatprep.subr.mxu0 0.0
    %280 = vmatpush1.msra.mxu0 0.0
    %281 = vmatprep.subr.mxu0 0.0
    %282 = vmatpush1.msra.mxu0 0.0
    %283 = vmatprep.subr.mxu0 0.0
    %284 = vmatpush1.msra.mxu0 0.0
    %285 = vmatprep.subr.mxu0 0.0
    %286 = vmatpush1.msra.mxu0 0.0
    %287 = vmatprep.subr.mxu0 0.0
    %288 = vmatpush1.msra.mxu0 0.0
    %289 = vmatprep.subr.mxu0 0.0
    %290 = vmatpush1.msra.mxu0 0.0
    %291 = vmatprep.subr.mxu0 0.0
    %292 = vmatpush1.msra.mxu0 0.0
    %293 = vmatprep.subr.mxu0 0.0
    %294 = vmatpush1.msra.mxu0 0.0
    %295 = vmatprep.subr.mxu0 0.0
    %296 = vmatpush1.msra.mxu0 0.0
    %297 = vmatprep.subr.mxu0 0.0
    %298 = vmatpush1.msra.mxu0 0.0
    %299 = vmatprep.subr.mxu0 0.0
    %300 = vmatpush1.msra.mxu0 0.0
    %301 = vmatprep.subr.mxu0 0.0
    %302 = vmatpush1.msra.mxu0 0.0
    %303 = vmatprep.subr.mxu0 0.0
    %304 = vmatpush1.msra.mxu0 0.0
    %305 = vmatprep.subr.mxu0 0.0
    %306 = vmatpush1.msra.mxu0 0.0
    %307 = vmatprep.subr.mxu0 0.0
    %308 = vmatpush1.msra.mxu0 0.0
    %309 = vmatprep.subr.mxu0 0.0
    %310 = vmatpush1.msra.mxu0 0.0
    %311 = vmatprep.subr.mxu0 0.0
    %312 = vmatpush1.msra.mxu0 0.0
    %313 = vmatprep.subr.mxu0 0.0
    %314 = vmatpush1.msra.mxu0 0.0
    %315 = vmatprep.mubr.f32.mxu0 0.0
    %316 = vmatmul.mubr.f32.gmra.mrb[0].mxu0 %v249
    %v317 = vpop.f32.mrb[0].mxu0
    %v318 = vadd.f32 0.0, %v317
    %v319 = vpop.f32.mrb[0].mxu0
    %320 = vdwg.mxu0
    %321 = vmatprep.subr.mxu0 0.0
    %322 = vmatpush1.msra.mxu0 %v236
    %323 = vmatprep.subr.mxu0 0.0
    %324 = vmatpush1.msra.mxu0 %v225
    %325 = vmatprep.subr.mxu0 0.0
    %326 = vmatpush1.msra.mxu0 %v245
    %327 = vmatprep.subr.mxu0 0.0
    %328 = vmatpush1.msra.mxu0 0.0
    %329 = vmatprep.subr.mxu0 0.0
    %330 = vmatpush1.msra.mxu0 0.0
    %331 = vmatprep.subr.mxu0 0.0
    %332 = vmatpush1.msra.mxu0 0.0
    %333 = vmatprep.subr.mxu0 0.0
    %334 = vmatpush1.msra.mxu0 0.0
    %335 = vmatprep.subr.mxu0 0.0
    %336 = vmatpush1.msra.mxu0 0.0
    %337 = vmatprep.subr.mxu0 0.0
    %338 = vmatpush1.msra.mxu0 0.0
    %339 = vmatprep.subr.mxu0 0.0
    %340 = vmatpush1.msra.mxu0 0.0
    %341 = vmatprep.subr.mxu0 0.0
    %342 = vmatpush1.msra.mxu0 0.0
    %343 = vmatprep.subr.mxu0 0.0
    %344 = vmatpush1.msra.mxu0 0.0
    %345 = vmatprep.subr.mxu0 0.0
    %346 = vmatpush1.msra.mxu0 0.0
    %347 = vmatprep.subr.mxu0 0.0
    %348 = vmatpush1.msra.mxu0 0.0
    %349 = vmatprep.subr.mxu0 0.0
    %350 = vmatpush1.msra.mxu0 0.0
    %351 = vmatprep.subr.mxu0 0.0
    %352 = vmatpush1.msra.mxu0 0.0
    %353 = vmatprep.subr.mxu0 0.0
    %354 = vmatpush1.msra.mxu0 0.0
    %355 = vmatprep.subr.mxu0 0.0
    %356 = vmatpush1.msra.mxu0 0.0
    %357 = vmatprep.subr.mxu0 0.0
    %358 = vmatpush1.msra.mxu0 0.0
    %359 = vmatprep.subr.mxu0 0.0
    %360 = vmatpush1.msra.mxu0 0.0
    %361 = vmatprep.subr.mxu0 0.0
    %362 = vmatpush1.msra.mxu0 0.0
    %363 = vmatprep.subr.mxu0 0.0
    %364 = vmatpush1.msra.mxu0 0.0
    %365 = vmatprep.subr.mxu0 0.0
    %366 = vmatpush1.msra.mxu0 0.0
    %367 = vmatprep.subr.mxu0 0.0
    %368 = vmatpush1.msra.mxu0 0.0
    %369 = vmatprep.subr.mxu0 0.0
    %370 = vmatpush1.msra.mxu0 0.0
    %371 = vmatprep.subr.mxu0 0.0
    %372 = vmatpush1.msra.mxu0 0.0
    %373 = vmatprep.subr.mxu0 0.0
    %374 = vmatpush1.msra.mxu0 0.0
    %375 = vmatprep.subr.mxu0 0.0
    %376 = vmatpush1.msra.mxu0 0.0
    %377 = vmatprep.subr.mxu0 0.0
    %378 = vmatpush1.msra.mxu0 0.0
    %379 = vmatprep.subr.mxu0 0.0
    %380 = vmatpush1.msra.mxu0 0.0
    %381 = vmatprep.subr.mxu0 0.0
    %382 = vmatpush1.msra.mxu0 0.0
    %383 = vmatprep.subr.mxu0 0.0
    %384 = vmatpush1.msra.mxu0 0.0
    %385 = vmatprep.mubr.f32.mxu0 0.0
    %386 = vmatmul.mubr.f32.gmra.mrb[0].mxu0 %v249
    %v387 = vpop.f32.mrb[0].mxu0
    %v388 = vadd.f32 0.0, %v387
    %v389 = vpop.f32.mrb[0].mxu0
    %390 = vdwg.mxu0
    %v391 = vsel %vm183, %v318, 0.0
    %v392 = vsel %vm183, %v388, 0.0
    %v393 = vadd.f32 %v391, %v392
    %394 = vadd.xlane.f32.xlu0 %v393
    %v395 = vpop.xlane.xlu0 %394
    %v396 = vmul.f32 %v318, %v318
    %v397 = vmul.f32 %v388, %v388
    %v398 = vsel %vm183, %v396, 0.0
    %v399 = vsel %vm183, %v397, 0.0
    %v400 = vadd.f32 %v398, %v399
    %401 = vadd.xlane.f32.xlu0 %v400
    %v402 = vpop.xlane.xlu0 %401
    %v403 = vmul.f32 %v395, 0.0625
    %v404 = vmul.f32 %v402, 0.0625
    %v405 = vmul.f32 %v403, %v403
    %v406 = vsub.f32 %v404, %v405
    %v407 = vmax.f32 %v406, 0.0
    %v408 = vadd.f32 %v407, 1e-05
    %v409 = vrsqrt.pop %v408
    %v410 = vmul.f32 %v409, %v23
    %v411 = vsub.f32 %v318, %v403
    %v412 = vsub.f32 %v388, %v403
    %414 = vset.pattern.permute.xlu0 0
    %415 = vperm.xlu0 %414, %v410
    %v416 = vpop.permute.xlu0 %415
    %v418 = vmul.f32 %v411, %v416
    %v419 = vmul.f32 %v412, %v416
    %421 = vset.pattern.permute.xlu0 0
    %422 = vperm.xlu0 %421, %v24
    %v423 = vpop.permute.xlu0 %422
    %v425 = vadd.f32 %v418, %v423
    %v426 = vadd.f32 %v419, %v423
    %v427 = vld [vmem:[%s3] sm:$0xff]
    %v429 = vrot.slane %v27, 4
    %vm430 = vcmask 31744
    %v432 = vsel %vm430, %v427, 0
    %v434 = vsel %vm36, %v429, 0
    %436 = vmatprep.subr.mxu0 0.0
    %437 = vmatpush1.msra.mxu0 %v434
    %438 = vmatprep.subr.mxu0 0.0
    %439 = vmatpush1.msra.mxu0 0.0
    %440 = vmatprep.subr.mxu0 0.0
    %441 = vmatpush1.msra.mxu0 0.0
    %442 = vmatprep.subr.mxu0 0.0
    %443 = vmatpush1.msra.mxu0 0.0
    %444 = vmatprep.subr.mxu0 0.0
    %445 = vmatpush1.msra.mxu0 0.0
    %446 = vmatprep.subr.mxu0 0.0
    %447 = vmatpush1.msra.mxu0 0.0
    %448 = vmatprep.subr.mxu0 0.0
    %449 = vmatpush1.msra.mxu0 0.0
    %450 = vmatprep.subr.mxu0 0.0
    %451 = vmatpush1.msra.mxu0 0.0
    %452 = vmatprep.subr.mxu0 0.0
    %453 = vmatpush1.msra.mxu0 0.0
    %454 = vmatprep.subr.mxu0 0.0
    %455 = vmatpush1.msra.mxu0 0.0
    %456 = vmatprep.subr.mxu0 0.0
    %457 = vmatpush1.msra.mxu0 0.0
    %458 = vmatprep.subr.mxu0 0.0
    %459 = vmatpush1.msra.mxu0 0.0
    %460 = vmatprep.subr.mxu0 0.0
    %461 = vmatpush1.msra.mxu0 0.0
    %462 = vmatprep.subr.mxu0 0.0
    %463 = vmatpush1.msra.mxu0 0.0
    %464 = vmatprep.subr.mxu0 0.0
    %465 = vmatpush1.msra.mxu0 0.0
    %466 = vmatprep.subr.mxu0 0.0
    %467 = vmatpush1.msra.mxu0 0.0
    %468 = vmatprep.subr.mxu0 0.0
    %469 = vmatpush1.msra.mxu0 0.0
    %470 = vmatprep.subr.mxu0 0.0
    %471 = vmatpush1.msra.mxu0 0.0
    %472 = vmatprep.subr.mxu0 0.0
    %473 = vmatpush1.msra.mxu0 0.0
    %474 = vmatprep.subr.mxu0 0.0
    %475 = vmatpush1.msra.mxu0 0.0
    %476 = vmatprep.subr.mxu0 0.0
    %477 = vmatpush1.msra.mxu0 0.0
    %478 = vmatprep.subr.mxu0 0.0
    %479 = vmatpush1.msra.mxu0 0.0
    %480 = vmatprep.subr.mxu0 0.0
    %481 = vmatpush1.msra.mxu0 0.0
    %482 = vmatprep.subr.mxu0 0.0
    %483 = vmatpush1.msra.mxu0 0.0
    %484 = vmatprep.subr.mxu0 0.0
    %485 = vmatpush1.msra.mxu0 0.0
    %486 = vmatprep.subr.mxu0 0.0
    %487 = vmatpush1.msra.mxu0 0.0
    %488 = vmatprep.subr.mxu0 0.0
    %489 = vmatpush1.msra.mxu0 0.0
    %490 = vmatprep.subr.mxu0 0.0
    %491 = vmatpush1.msra.mxu0 0.0
    %492 = vmatprep.subr.mxu0 0.0
    %493 = vmatpush1.msra.mxu0 0.0
    %494 = vmatprep.subr.mxu0 0.0
    %495 = vmatpush1.msra.mxu0 0.0
    %496 = vmatprep.subr.mxu0 0.0
    %497 = vmatpush1.msra.mxu0 0.0
    %498 = vmatprep.subr.mxu0 0.0
    %499 = vmatpush1.msra.mxu0 0.0
    %500 = vmatprep.mubr.f32.mxu0 0.0
    %501 = vmatmul.mubr.f32.gmra.mrb[0].mxu0 %v432
    %v502 = vpop.f32.mrb[0].mxu0
    %v503 = vadd.f32 0.0, %v502
    %v504 = vpop.f32.mrb[0].mxu0
    %505 = vdwg.mxu0
    %v507 = vrot.slane %v29, 4
    %v508 = vsel %vm36, %v507, 0
    %510 = vmatprep.subr.mxu0 0.0
    %511 = vmatpush1.msra.mxu0 %v508
    %512 = vmatprep.subr.mxu0 0.0
    %513 = vmatpush1.msra.mxu0 0.0
    %514 = vmatprep.subr.mxu0 0.0
    %515 = vmatpush1.msra.mxu0 0.0
    %516 = vmatprep.subr.mxu0 0.0
    %517 = vmatpush1.msra.mxu0 0.0
    %518 = vmatprep.subr.mxu0 0.0
    %519 = vmatpush1.msra.mxu0 0.0
    %520 = vmatprep.subr.mxu0 0.0
    %521 = vmatpush1.msra.mxu0 0.0
    %522 = vmatprep.subr.mxu0 0.0
    %523 = vmatpush1.msra.mxu0 0.0
    %524 = vmatprep.subr.mxu0 0.0
    %525 = vmatpush1.msra.mxu0 0.0
    %526 = vmatprep.subr.mxu0 0.0
    %527 = vmatpush1.msra.mxu0 0.0
    %528 = vmatprep.subr.mxu0 0.0
    %529 = vmatpush1.msra.mxu0 0.0
    %530 = vmatprep.subr.mxu0 0.0
    %531 = vmatpush1.msra.mxu0 0.0
    %532 = vmatprep.subr.mxu0 0.0
    %533 = vmatpush1.msra.mxu0 0.0
    %534 = vmatprep.subr.mxu0 0.0
    %535 = vmatpush1.msra.mxu0 0.0
    %536 = vmatprep.subr.mxu0 0.0
    %537 = vmatpush1.msra.mxu0 0.0
    %538 = vmatprep.subr.mxu0 0.0
    %539 = vmatpush1.msra.mxu0 0.0
    %540 = vmatprep.subr.mxu0 0.0
    %541 = vmatpush1.msra.mxu0 0.0
    %542 = vmatprep.subr.mxu0 0.0
    %543 = vmatpush1.msra.mxu0 0.0
    %544 = vmatprep.subr.mxu0 0.0
    %545 = vmatpush1.msra.mxu0 0.0
    %546 = vmatprep.subr.mxu0 0.0
    %547 = vmatpush1.msra.mxu0 0.0
    %548 = vmatprep.subr.mxu0 0.0
    %549 = vmatpush1.msra.mxu0 0.0
    %550 = vmatprep.subr.mxu0 0.0
    %551 = vmatpush1.msra.mxu0 0.0
    %552 = vmatprep.subr.mxu0 0.0
    %553 = vmatpush1.msra.mxu0 0.0
    %554 = vmatprep.subr.mxu0 0.0
    %555 = vmatpush1.msra.mxu0 0.0
    %556 = vmatprep.subr.mxu0 0.0
    %557 = vmatpush1.msra.mxu0 0.0
    %558 = vmatprep.subr.mxu0 0.0
    %559 = vmatpush1.msra.mxu0 0.0
    %560 = vmatprep.subr.mxu0 0.0
    %561 = vmatpush1.msra.mxu0 0.0
    %562 = vmatprep.subr.mxu0 0.0
    %563 = vmatpush1.msra.mxu0 0.0
    %564 = vmatprep.subr.mxu0 0.0
    %565 = vmatpush1.msra.mxu0 0.0
    %566 = vmatprep.subr.mxu0 0.0
    %567 = vmatpush1.msra.mxu0 0.0
    %568 = vmatprep.subr.mxu0 0.0
    %569 = vmatpush1.msra.mxu0 0.0
    %570 = vmatprep.subr.mxu0 0.0
    %571 = vmatpush1.msra.mxu0 0.0
    %572 = vmatprep.subr.mxu0 0.0
    %573 = vmatpush1.msra.mxu0 0.0
    %574 = vmatprep.mubr.f32.mxu0 0.0
    %575 = vmatmul.mubr.f32.gmra.mrb[0].mxu0 %v432
    %v576 = vpop.f32.mrb[0].mxu0
    %v577 = vadd.f32 0.0, %v576
    %v578 = vpop.f32.mrb[0].mxu0
    %579 = vdwg.mxu0
    %v580 = vsel %vm183, %v503, 0.0
    %v581 = vsel %vm183, %v577, 0.0
    %v582 = vadd.f32 %v580, %v581
    %583 = vadd.xlane.f32.xlu0 %v582
    %v584 = vpop.xlane.xlu0 %583
    %v585 = vmul.f32 %v503, %v503
    %v586 = vmul.f32 %v577, %v577
    %v587 = vsel %vm183, %v585, 0.0
    %v588 = vsel %vm183, %v586, 0.0
    %v589 = vadd.f32 %v587, %v588
    %590 = vadd.xlane.f32.xlu0 %v589
    %v591 = vpop.xlane.xlu0 %590
    %v592 = vmul.f32 %v584, 0.0625
    %v593 = vmul.f32 %v591, 0.0625
    %v594 = vmul.f32 %v592, %v592
    %v595 = vsub.f32 %v593, %v594
    %v596 = vmax.f32 %v595, 0.0
    %v597 = vadd.f32 %v596, 1e-05
    %v598 = vrsqrt.pop %v597
    %v599 = vmul.f32 %v598, %v25
    %v600 = vsub.f32 %v503, %v592
    %v601 = vsub.f32 %v577, %v592
    %603 = vset.pattern.permute.xlu0 0
    %604 = vperm.xlu0 %603, %v599
    %v605 = vpop.permute.xlu0 %604
    %v607 = vmul.f32 %v600, %v605
    %v608 = vmul.f32 %v601, %v605
    %610 = vset.pattern.permute.xlu0 0
    %611 = vperm.xlu0 %610, %v26
    %v612 = vpop.permute.xlu0 %611
    %v614 = vadd.f32 %v607, %v612
    %v615 = vadd.f32 %v608, %v612
    %v616 = vadd.f32 %v425, %v614
    %v617 = vadd.f32 %v426, %v615
    %vm618 = vcmp.ge.f32.partialorder %v616, 0.0
    %vm619 = vcmp.ge.f32.partialorder %v617, 0.0
    %v620 = vmul.f32 %v616, 0.01
    %v621 = vmul.f32 %v617, 0.01
    %v622 = vsel %vm618, %v616, %v620
    %v623 = vsel %vm619, %v617, %v621
    %624 = vst.msk [vmem:[#allocation2] sm:$0xff] %vm183, %v622
    %625 = vst.msk [vmem:[#allocation2 + $0x8] sm:$0xff] %vm183, %v623
    // Predicated region
    $region22: #{tpu_custom_call.1} parent=1 // pred_check
      _
    $region23: #{tpu_custom_call.1} parent=1 // pred_check_branch
      %627 = sbr.rel (0) target = $region25
    $region24: #{tpu_custom_call.1} parent=1 // pred_region
      %s629 = ssub.s32 256, 256
      %630 = vsyncadd [#allocation3], %s629
      %s631 = sshll.u32 [#allocation2], 4
      %s632 = int_to_ptr.vmem [resolvable:$true] %s631
      %637 = dma.vmem_to_hbm [thread:$0]  %s632, 256, %s5, [#allocation3], 128, 128, 8
    $region25: #{tpu_custom_call.1} parent=1 // pred_fallthru
      _
    // Predicated region
    $region26: #{tpu_custom_call.1} parent=1 // pred_check
      _
    $region27: #{tpu_custom_call.1} parent=1 // pred_check_branch
      %639 = sbr.rel (0) target = $region29
    $region28: #{tpu_custom_call.1} parent=1 // pred_region
      %640 = dma.done [#allocation3], 256
    $region29: #{tpu_custom_call.1} parent=1 // pred_fallthru
      _
    %641 = vsyncpa [#allocation3], 1

</llo_original>
